<compile_context>
chip_gen: v7x
topology: tpu7x:2x2x1
jax: 0.10.0
libtpu: 0.0.40
codegen_flags: <defaults>
</compile_context>

<pallas_src>
import functools

import jax
import jax.numpy as jnp
import numpy as np
from jax import lax
from jax.experimental import pallas as pl
from jax.experimental.pallas import tpu as pltpu


def _bert_embedding_kernel(
    # scalar-prefetch operand (SMEM)
    src_smem,      # (B, S) int32 token ids
    # tensor operands
    tok_hbm,       # (V, D) token table, left in HBM (pl.ANY), row-gathered via DMA
    pos_ref,       # (S, D) VMEM block: positional rows, resident for the whole kernel
    segtab_ref,    # (2, D) VMEM block: full segment table
    segcol_ref,    # (1, T, 1) VMEM block: segment ids of this tile as float32
    # output
    out_ref,       # (1, T, D)
    # scratch
    gather_buf,    # (2, T, D) VMEM: double-buffered gathered token rows
    sems,          # (2,) DMA semaphores, one per buffer slot
    *,
    unroll,
):
    b = pl.program_id(0)
    t = pl.program_id(1)
    nt = pl.num_programs(1)
    T = gather_buf.shape[1]
    slot = t & 1

    def issue_tile(t_idx, buf_slot):
        """Start DMAs gathering the T token rows of seq-tile `t_idx` into `buf_slot`.

        All T copies signal the same per-slot semaphore; the consumer waits once
        with a descriptor covering the whole (T, D) slot.
        """
        col0 = t_idx * T

        def body(i, carry):
            tok_id = src_smem[b, col0 + i]
            pltpu.make_async_copy(
                tok_hbm.at[pl.ds(tok_id, 1), :],
                gather_buf.at[buf_slot, pl.ds(i, 1), :],
                sems.at[buf_slot],
            ).start()
            return carry

        lax.fori_loop(0, T, body, 0, unroll=unroll)

    # Prime the pipeline at the start of each batch row.  Safe under megacore
    # splitting of the batch axis: every core's first step in a row has t == 0.
    @pl.when(t == 0)
    def _():
        issue_tile(0, 0)

    # Prefetch the next seq-tile's token rows into the other buffer while the
    # current tile is consumed.
    @pl.when(t + 1 < nt)
    def _():
        issue_tile(t + 1, 1 - slot)

    # Single wait for all T row DMAs of this tile: each (1, D) copy signaled
    # sems[slot] by D*itemsize bytes, so a descriptor sized to the whole (T, D)
    # slot waits for exactly all of them.
    pltpu.make_async_copy(
        gather_buf.at[slot], gather_buf.at[slot], sems.at[slot]
    ).wait()

    # Vectorized combine, accumulated in f32:
    #   out = tok + pos + (seg0 + s * (seg1 - seg0))
    row0 = pl.multiple_of(t * T, T)
    tok = gather_buf[slot].astype(jnp.float32)                    # (T, D)
    pos = pos_ref[pl.ds(row0, T), :].astype(jnp.float32)          # (T, D)
    seg0 = segtab_ref[0:1, :].astype(jnp.float32)                 # (1, D)
    seg1 = segtab_ref[1:2, :].astype(jnp.float32)                 # (1, D)
    s = segcol_ref[0].astype(jnp.float32)                         # (T, 1)
    seg_emb = seg0 + s * (seg1 - seg0)                            # (T, D)
    out_ref[0] = (tok + pos + seg_emb).astype(out_ref.dtype)


def _pick_row_tile(seq_len):
    # Prefer num_tiles >= 2 so the double buffer actually overlaps DMA with
    # compute, and keep tiles modest (<=128 rows) so one tile of lookahead hides
    # most of the per-row gather latency.
    for t in (128, 64, 32, 16, 8):
        if seq_len % t == 0 and seq_len // t >= 2:
            return t
    return seq_len


def _vmem_capacity_bytes():
    try:
        info = pltpu.get_tpu_info()
        cap = getattr(info, "vmem_capacity_bytes", None)
        if cap:
            return int(cap)
    except Exception:
        pass
    return 64 * 1024 * 1024  # v7x per-TensorCore VMEM (smallest in the fleet)


def bert_embedding(src, seg, tok_table, pos_table, seg_table, *, row_tile=None,
                   out_dtype=None):
    """src, seg: (B, S) int; tables: (V, D), (max_len, D), (2, D). Returns (B, S, D)."""
    B, S = src.shape
    V, D = tok_table.shape
    max_len = pos_table.shape[0]
    assert seg_table.shape == (2, D) and pos_table.shape[1] == D
    assert S <= max_len, "seq_len must not exceed the positional table"
    assert S % 8 == 0, "seq_len must be a multiple of 8 (TPU sublane tile)"
    assert D % 128 == 0, "d_model must be a multiple of 128 (lane-dense output)"

    T = row_tile if row_tile is not None else _pick_row_tile(S)
    assert S % T == 0 and T % 8 == 0
    num_t = S // T

    out_dtype = out_dtype or tok_table.dtype
    src = src.astype(jnp.int32)
    # Segment ids as a float column so the segment embedding is computed
    # vectorized in-kernel (seg ids expected in {0, 1}).
    seg_col = seg.astype(jnp.float32).reshape(B, S, 1)
    # Only the positional rows actually used; VMEM-resident (constant block index).
    pos_rows = pos_table[:S]

    kernel = functools.partial(_bert_embedding_kernel, unroll=8)

    tok_isz = jnp.dtype(tok_table.dtype).itemsize
    pos_isz = jnp.dtype(pos_table.dtype).itemsize
    seg_isz = jnp.dtype(seg_table.dtype).itemsize
    out_isz = jnp.dtype(out_dtype).itemsize
    vmem_bytes = (
        2 * T * D * out_isz        # output blocks (double-buffered by Pallas)
        + 2 * S * D * pos_isz      # pos rows (worst-case 2 buffers)
        + 2 * 2 * D * seg_isz      # segment-table blocks
        + 2 * T * 4                # segment-id column blocks
        + 2 * T * D * tok_isz      # gather scratch
    )
    vmem_cap = _vmem_capacity_bytes()
    vmem_limit = int(min(max(2 * vmem_bytes, 32 << 20), int(0.8 * vmem_cap)))

    grid_spec = pltpu.PrefetchScalarGridSpec(
        num_scalar_prefetch=1,                    # src -> SMEM, drives the DMA gather
        grid=(B, num_t),
        in_specs=[
            pl.BlockSpec(memory_space=pl.ANY),                      # token table in HBM
            pl.BlockSpec((S, D), lambda b, t, src: (0, 0)),         # pos rows, resident
            pl.BlockSpec((2, D), lambda b, t, src: (0, 0)),         # segment table
            pl.BlockSpec((1, T, 1), lambda b, t, src: (b, t, 0)),   # segment-id column
        ],
        out_specs=pl.BlockSpec((1, T, D), lambda b, t, src: (b, t, 0)),
        scratch_shapes=[
            pltpu.VMEM((2, T, D), tok_table.dtype),
            pltpu.SemaphoreType.DMA((2,)),
        ],
    )

    return pl.pallas_call(
        kernel,
        out_shape=jax.ShapeDtypeStruct((B, S, D), out_dtype),
        grid_spec=grid_spec,
        compiler_params=pltpu.CompilerParams(
            dimension_semantics=("parallel", "arbitrary"),
            vmem_limit_bytes=vmem_limit,
        ),
    )(src, tok_table, pos_rows, seg_table, seg_col)


if __name__ == "__main__":
    # Small, deterministic config consistent with the module's forward.
    vocab_size = 64
    max_len = 32
    d_model = 128
    batch_size = 2
    seq_len = 16

    key = jax.random.PRNGKey(0)
    k_tok, k_pos, k_seg, k_src = jax.random.split(key, 4)

    # nn.Embedding default init ~ N(0, 1)
    tok_table = jax.random.normal(k_tok, (vocab_size, d_model), dtype=jnp.float32)
    pos_table = jax.random.normal(k_pos, (max_len, d_model), dtype=jnp.float32)
    seg_table = jax.random.normal(k_seg, (2, d_model), dtype=jnp.float32)

    src = jax.random.randint(k_src, (batch_size, seq_len), 0, vocab_size, dtype=jnp.int32)
    seg = (jax.lax.broadcasted_iota(jnp.int32, (batch_size, seq_len), 1)
           >= (seq_len // 2)).astype(jnp.int32)  # e.g. [0,0,...,1,1,...]

    out = jax.block_until_ready(bert_embedding(src, seg, tok_table, pos_table, seg_table))

    # Plain-JAX reference for a correctness sanity check.
    ref = (tok_table[src]
           + pos_table[jnp.arange(seq_len)][None, :, :]
           + seg_table[seg])
    assert out.shape == (batch_size, seq_len, d_model)
    np.testing.assert_allclose(np.asarray(out), np.asarray(ref), rtol=1e-5, atol=1e-5)

    print("KERNEL_OK")
</pallas_src>

<mosaic_0001>
module attributes {stable_mosaic.version = 11 : i64} {
  func.func @_bert_embedding_kernel(%arg0: i32, %arg1: i32, %arg2: memref<2x16xi32, #tpu.memory_space<smem>>, %arg3: memref<64x128xf32, #tpu.memory_space<any>>, %arg4: memref<16x128xf32, #tpu.memory_space<vmem>>, %arg5: memref<2x128xf32, #tpu.memory_space<vmem>>, %arg6: memref<1x8x1xf32, #tpu.memory_space<vmem>>, %arg7: memref<1x8x128xf32, #tpu.memory_space<vmem>>, %arg8: memref<2x8x128xf32, #tpu.memory_space<vmem>>, %arg9: memref<2x!tpu.dma_semaphore, #tpu.memory_space<semaphore_mem>>) attributes {dimension_semantics = [#tpu.dimension_semantics<parallel>, #tpu.dimension_semantics<arbitrary>], iteration_bounds = array<i64: 2, 2>, scalar_prefetch = 1 : i64, scratch_operands = 2 : i64, tpu.core_type = #tpu.core_type<tc>, window_params = [{}, {pipeline_mode = #tpu.pipeline_mode<synchronous>, transform_indices = @transform_1, window_bounds = array<i64: 16, 128>}, {pipeline_mode = #tpu.pipeline_mode<synchronous>, transform_indices = @transform_2, window_bounds = array<i64: 2, 128>}, {transform_indices = @transform_3, window_bounds = array<i64: 1, 8, 1>}, {transform_indices = @transform_4, window_bounds = array<i64: 1, 8, 128>}]} {
    %c1_i32 = arith.constant 1 : i32
    %0 = arith.andi %arg1, %c1_i32 : i32
    %c0_i32 = arith.constant 0 : i32
    %1 = arith.cmpi eq, %arg1, %c0_i32 : i32
    %2 = arith.extui %1 : i1 to i32
    %c0_i32_0 = arith.constant 0 : i32
    %3 = arith.cmpi ne, %2, %c0_i32_0 : i32
    scf.if %3 {
      %c0_i32_18 = arith.constant 0 : i32
      %c0_i32_19 = arith.constant 0 : i32
      %36 = arith.addi %c0_i32_19, %c0_i32_18 : i32
      %37 = arith.index_cast %arg0 : i32 to index
      %38 = arith.index_cast %36 : i32 to index
      %39 = memref.load %arg2[%37, %38] : memref<2x16xi32, #tpu.memory_space<smem>>
      %c0_i32_20 = arith.constant 0 : i32
      %c0_i32_21 = arith.constant 0 : i32
      %c0_i32_22 = arith.constant 0 : i32
      %40 = tpu.memref_slice %arg3[%39, %c0_i32_22] : memref<64x128xf32, #tpu.memory_space<any>> -> memref<1x128xf32, #tpu.memory_space<any>>
      %c0_i32_23 = arith.constant 0 : i32
      %41 = tpu.memref_slice %arg8[%c0_i32_20, %c0_i32_18, %c0_i32_23] : memref<2x8x128xf32, #tpu.memory_space<vmem>> -> memref<1x1x128xf32, #tpu.memory_space<vmem>>
      %42 = tpu.memref_squeeze %41 : memref<1x1x128xf32, #tpu.memory_space<vmem>> -> memref<1x128xf32, #tpu.memory_space<vmem>>
      %43 = tpu.memref_slice %arg9[%c0_i32_21] : memref<2x!tpu.dma_semaphore, #tpu.memory_space<semaphore_mem>> -> memref<1x!tpu.dma_semaphore, #tpu.memory_space<semaphore_mem>>
      %44 = tpu.memref_squeeze %43 : memref<1x!tpu.dma_semaphore, #tpu.memory_space<semaphore_mem>> -> memref<!tpu.dma_semaphore, #tpu.memory_space<semaphore_mem>>
      tpu.enqueue_dma source(%40 : memref<1x128xf32, #tpu.memory_space<any>>) target(%42 : memref<1x128xf32, #tpu.memory_space<vmem>>) target_semaphore(%44 : memref<!tpu.dma_semaphore, #tpu.memory_space<semaphore_mem>>)
      %c1_i32_24 = arith.constant 1 : i32
      %c0_i32_25 = arith.constant 0 : i32
      %45 = arith.addi %c0_i32_25, %c1_i32_24 : i32
      %46 = arith.index_cast %arg0 : i32 to index
      %47 = arith.index_cast %45 : i32 to index
      %48 = memref.load %arg2[%46, %47] : memref<2x16xi32, #tpu.memory_space<smem>>
      %c0_i32_26 = arith.constant 0 : i32
      %c0_i32_27 = arith.constant 0 : i32
      %c0_i32_28 = arith.constant 0 : i32
      %49 = tpu.memref_slice %arg3[%48, %c0_i32_28] : memref<64x128xf32, #tpu.memory_space<any>> -> memref<1x128xf32, #tpu.memory_space<any>>
      %c0_i32_29 = arith.constant 0 : i32
      %50 = tpu.memref_slice %arg8[%c0_i32_26, %c1_i32_24, %c0_i32_29] : memref<2x8x128xf32, #tpu.memory_space<vmem>> -> memref<1x1x128xf32, #tpu.memory_space<vmem>>
      %51 = tpu.memref_squeeze %50 : memref<1x1x128xf32, #tpu.memory_space<vmem>> -> memref<1x128xf32, #tpu.memory_space<vmem>>
      %52 = tpu.memref_slice %arg9[%c0_i32_27] : memref<2x!tpu.dma_semaphore, #tpu.memory_space<semaphore_mem>> -> memref<1x!tpu.dma_semaphore, #tpu.memory_space<semaphore_mem>>
      %53 = tpu.memref_squeeze %52 : memref<1x!tpu.dma_semaphore, #tpu.memory_space<semaphore_mem>> -> memref<!tpu.dma_semaphore, #tpu.memory_space<semaphore_mem>>
      tpu.enqueue_dma source(%49 : memref<1x128xf32, #tpu.memory_space<any>>) target(%51 : memref<1x128xf32, #tpu.memory_space<vmem>>) target_semaphore(%53 : memref<!tpu.dma_semaphore, #tpu.memory_space<semaphore_mem>>)
      %c2_i32_30 = arith.constant 2 : i32
      %c0_i32_31 = arith.constant 0 : i32
      %54 = arith.addi %c0_i32_31, %c2_i32_30 : i32
      %55 = arith.index_cast %arg0 : i32 to index
      %56 = arith.index_cast %54 : i32 to index
      %57 = memref.load %arg2[%55, %56] : memref<2x16xi32, #tpu.memory_space<smem>>
      %c0_i32_32 = arith.constant 0 : i32
      %c0_i32_33 = arith.constant 0 : i32
      %c0_i32_34 = arith.constant 0 : i32
      %58 = tpu.memref_slice %arg3[%57, %c0_i32_34] : memref<64x128xf32, #tpu.memory_space<any>> -> memref<1x128xf32, #tpu.memory_space<any>>
      %c0_i32_35 = arith.constant 0 : i32
      %59 = tpu.memref_slice %arg8[%c0_i32_32, %c2_i32_30, %c0_i32_35] : memref<2x8x128xf32, #tpu.memory_space<vmem>> -> memref<1x1x128xf32, #tpu.memory_space<vmem>>
      %60 = tpu.memref_squeeze %59 : memref<1x1x128xf32, #tpu.memory_space<vmem>> -> memref<1x128xf32, #tpu.memory_space<vmem>>
      %61 = tpu.memref_slice %arg9[%c0_i32_33] : memref<2x!tpu.dma_semaphore, #tpu.memory_space<semaphore_mem>> -> memref<1x!tpu.dma_semaphore, #tpu.memory_space<semaphore_mem>>
      %62 = tpu.memref_squeeze %61 : memref<1x!tpu.dma_semaphore, #tpu.memory_space<semaphore_mem>> -> memref<!tpu.dma_semaphore, #tpu.memory_space<semaphore_mem>>
      tpu.enqueue_dma source(%58 : memref<1x128xf32, #tpu.memory_space<any>>) target(%60 : memref<1x128xf32, #tpu.memory_space<vmem>>) target_semaphore(%62 : memref<!tpu.dma_semaphore, #tpu.memory_space<semaphore_mem>>)
      %c3_i32 = arith.constant 3 : i32
      %c0_i32_36 = arith.constant 0 : i32
      %63 = arith.addi %c0_i32_36, %c3_i32 : i32
      %64 = arith.index_cast %arg0 : i32 to index
      %65 = arith.index_cast %63 : i32 to index
      %66 = memref.load %arg2[%64, %65] : memref<2x16xi32, #tpu.memory_space<smem>>
      %c0_i32_37 = arith.constant 0 : i32
      %c0_i32_38 = arith.constant 0 : i32
      %c0_i32_39 = arith.constant 0 : i32
      %67 = tpu.memref_slice %arg3[%66, %c0_i32_39] : memref<64x128xf32, #tpu.memory_space<any>> -> memref<1x128xf32, #tpu.memory_space<any>>
      %c0_i32_40 = arith.constant 0 : i32
      %68 = tpu.memref_slice %arg8[%c0_i32_37, %c3_i32, %c0_i32_40] : memref<2x8x128xf32, #tpu.memory_space<vmem>> -> memref<1x1x128xf32, #tpu.memory_space<vmem>>
      %69 = tpu.memref_squeeze %68 : memref<1x1x128xf32, #tpu.memory_space<vmem>> -> memref<1x128xf32, #tpu.memory_space<vmem>>
      %70 = tpu.memref_slice %arg9[%c0_i32_38] : memref<2x!tpu.dma_semaphore, #tpu.memory_space<semaphore_mem>> -> memref<1x!tpu.dma_semaphore, #tpu.memory_space<semaphore_mem>>
      %71 = tpu.memref_squeeze %70 : memref<1x!tpu.dma_semaphore, #tpu.memory_space<semaphore_mem>> -> memref<!tpu.dma_semaphore, #tpu.memory_space<semaphore_mem>>
      tpu.enqueue_dma source(%67 : memref<1x128xf32, #tpu.memory_space<any>>) target(%69 : memref<1x128xf32, #tpu.memory_space<vmem>>) target_semaphore(%71 : memref<!tpu.dma_semaphore, #tpu.memory_space<semaphore_mem>>)
      %c4_i32 = arith.constant 4 : i32
      %c0_i32_41 = arith.constant 0 : i32
      %72 = arith.addi %c0_i32_41, %c4_i32 : i32
      %73 = arith.index_cast %arg0 : i32 to index
      %74 = arith.index_cast %72 : i32 to index
      %75 = memref.load %arg2[%73, %74] : memref<2x16xi32, #tpu.memory_space<smem>>
      %c0_i32_42 = arith.constant 0 : i32
      %c0_i32_43 = arith.constant 0 : i32
      %c0_i32_44 = arith.constant 0 : i32
      %76 = tpu.memref_slice %arg3[%75, %c0_i32_44] : memref<64x128xf32, #tpu.memory_space<any>> -> memref<1x128xf32, #tpu.memory_space<any>>
      %c0_i32_45 = arith.constant 0 : i32
      %77 = tpu.memref_slice %arg8[%c0_i32_42, %c4_i32, %c0_i32_45] : memref<2x8x128xf32, #tpu.memory_space<vmem>> -> memref<1x1x128xf32, #tpu.memory_space<vmem>>
      %78 = tpu.memref_squeeze %77 : memref<1x1x128xf32, #tpu.memory_space<vmem>> -> memref<1x128xf32, #tpu.memory_space<vmem>>
      %79 = tpu.memref_slice %arg9[%c0_i32_43] : memref<2x!tpu.dma_semaphore, #tpu.memory_space<semaphore_mem>> -> memref<1x!tpu.dma_semaphore, #tpu.memory_space<semaphore_mem>>
      %80 = tpu.memref_squeeze %79 : memref<1x!tpu.dma_semaphore, #tpu.memory_space<semaphore_mem>> -> memref<!tpu.dma_semaphore, #tpu.memory_space<semaphore_mem>>
      tpu.enqueue_dma source(%76 : memref<1x128xf32, #tpu.memory_space<any>>) target(%78 : memref<1x128xf32, #tpu.memory_space<vmem>>) target_semaphore(%80 : memref<!tpu.dma_semaphore, #tpu.memory_space<semaphore_mem>>)
      %c5_i32 = arith.constant 5 : i32
      %c0_i32_46 = arith.constant 0 : i32
      %81 = arith.addi %c0_i32_46, %c5_i32 : i32
      %82 = arith.index_cast %arg0 : i32 to index
      %83 = arith.index_cast %81 : i32 to index
      %84 = memref.load %arg2[%82, %83] : memref<2x16xi32, #tpu.memory_space<smem>>
      %c0_i32_47 = arith.constant 0 : i32
      %c0_i32_48 = arith.constant 0 : i32
      %c0_i32_49 = arith.constant 0 : i32
      %85 = tpu.memref_slice %arg3[%84, %c0_i32_49] : memref<64x128xf32, #tpu.memory_space<any>> -> memref<1x128xf32, #tpu.memory_space<any>>
      %c0_i32_50 = arith.constant 0 : i32
      %86 = tpu.memref_slice %arg8[%c0_i32_47, %c5_i32, %c0_i32_50] : memref<2x8x128xf32, #tpu.memory_space<vmem>> -> memref<1x1x128xf32, #tpu.memory_space<vmem>>
      %87 = tpu.memref_squeeze %86 : memref<1x1x128xf32, #tpu.memory_space<vmem>> -> memref<1x128xf32, #tpu.memory_space<vmem>>
      %88 = tpu.memref_slice %arg9[%c0_i32_48] : memref<2x!tpu.dma_semaphore, #tpu.memory_space<semaphore_mem>> -> memref<1x!tpu.dma_semaphore, #tpu.memory_space<semaphore_mem>>
      %89 = tpu.memref_squeeze %88 : memref<1x!tpu.dma_semaphore, #tpu.memory_space<semaphore_mem>> -> memref<!tpu.dma_semaphore, #tpu.memory_space<semaphore_mem>>
      tpu.enqueue_dma source(%85 : memref<1x128xf32, #tpu.memory_space<any>>) target(%87 : memref<1x128xf32, #tpu.memory_space<vmem>>) target_semaphore(%89 : memref<!tpu.dma_semaphore, #tpu.memory_space<semaphore_mem>>)
      %c6_i32 = arith.constant 6 : i32
      %c0_i32_51 = arith.constant 0 : i32
      %90 = arith.addi %c0_i32_51, %c6_i32 : i32
      %91 = arith.index_cast %arg0 : i32 to index
      %92 = arith.index_cast %90 : i32 to index
      %93 = memref.load %arg2[%91, %92] : memref<2x16xi32, #tpu.memory_space<smem>>
      %c0_i32_52 = arith.constant 0 : i32
      %c0_i32_53 = arith.constant 0 : i32
      %c0_i32_54 = arith.constant 0 : i32
      %94 = tpu.memref_slice %arg3[%93, %c0_i32_54] : memref<64x128xf32, #tpu.memory_space<any>> -> memref<1x128xf32, #tpu.memory_space<any>>
      %c0_i32_55 = arith.constant 0 : i32
      %95 = tpu.memref_slice %arg8[%c0_i32_52, %c6_i32, %c0_i32_55] : memref<2x8x128xf32, #tpu.memory_space<vmem>> -> memref<1x1x128xf32, #tpu.memory_space<vmem>>
      %96 = tpu.memref_squeeze %95 : memref<1x1x128xf32, #tpu.memory_space<vmem>> -> memref<1x128xf32, #tpu.memory_space<vmem>>
      %97 = tpu.memref_slice %arg9[%c0_i32_53] : memref<2x!tpu.dma_semaphore, #tpu.memory_space<semaphore_mem>> -> memref<1x!tpu.dma_semaphore, #tpu.memory_space<semaphore_mem>>
      %98 = tpu.memref_squeeze %97 : memref<1x!tpu.dma_semaphore, #tpu.memory_space<semaphore_mem>> -> memref<!tpu.dma_semaphore, #tpu.memory_space<semaphore_mem>>
      tpu.enqueue_dma source(%94 : memref<1x128xf32, #tpu.memory_space<any>>) target(%96 : memref<1x128xf32, #tpu.memory_space<vmem>>) target_semaphore(%98 : memref<!tpu.dma_semaphore, #tpu.memory_space<semaphore_mem>>)
      %c7_i32 = arith.constant 7 : i32
      %c0_i32_56 = arith.constant 0 : i32
      %99 = arith.addi %c0_i32_56, %c7_i32 : i32
      %100 = arith.index_cast %arg0 : i32 to index
      %101 = arith.index_cast %99 : i32 to index
      %102 = memref.load %arg2[%100, %101] : memref<2x16xi32, #tpu.memory_space<smem>>
      %c0_i32_57 = arith.constant 0 : i32
      %c0_i32_58 = arith.constant 0 : i32
      %c0_i32_59 = arith.constant 0 : i32
      %103 = tpu.memref_slice %arg3[%102, %c0_i32_59] : memref<64x128xf32, #tpu.memory_space<any>> -> memref<1x128xf32, #tpu.memory_space<any>>
      %c0_i32_60 = arith.constant 0 : i32
      %104 = tpu.memref_slice %arg8[%c0_i32_57, %c7_i32, %c0_i32_60] : memref<2x8x128xf32, #tpu.memory_space<vmem>> -> memref<1x1x128xf32, #tpu.memory_space<vmem>>
      %105 = tpu.memref_squeeze %104 : memref<1x1x128xf32, #tpu.memory_space<vmem>> -> memref<1x128xf32, #tpu.memory_space<vmem>>
      %106 = tpu.memref_slice %arg9[%c0_i32_58] : memref<2x!tpu.dma_semaphore, #tpu.memory_space<semaphore_mem>> -> memref<1x!tpu.dma_semaphore, #tpu.memory_space<semaphore_mem>>
      %107 = tpu.memref_squeeze %106 : memref<1x!tpu.dma_semaphore, #tpu.memory_space<semaphore_mem>> -> memref<!tpu.dma_semaphore, #tpu.memory_space<semaphore_mem>>
      tpu.enqueue_dma source(%103 : memref<1x128xf32, #tpu.memory_space<any>>) target(%105 : memref<1x128xf32, #tpu.memory_space<vmem>>) target_semaphore(%107 : memref<!tpu.dma_semaphore, #tpu.memory_space<semaphore_mem>>)
      %c8_i32_61 = arith.constant 8 : i32
    } else {
    }
    %c1_i32_1 = arith.constant 1 : i32
    %4 = arith.addi %arg1, %c1_i32_1 : i32
    %c2_i32 = arith.constant 2 : i32
    %5 = arith.cmpi slt, %4, %c2_i32 : i32
    %6 = arith.extui %5 : i1 to i32
    %c0_i32_2 = arith.constant 0 : i32
    %7 = arith.cmpi ne, %6, %c0_i32_2 : i32
    scf.if %7 {
      %c1_i32_18 = arith.constant 1 : i32
      %36 = arith.addi %arg1, %c1_i32_18 : i32
      %c1_i32_19 = arith.constant 1 : i32
      %37 = arith.subi %c1_i32_19, %0 : i32
      %c8_i32_20 = arith.constant 8 : i32
      %38 = arith.muli %36, %c8_i32_20 : i32
      %c0_i32_21 = arith.constant 0 : i32
      %39 = arith.addi %38, %c0_i32_21 : i32
      %40 = arith.index_cast %arg0 : i32 to index
      %41 = arith.index_cast %39 : i32 to index
      %42 = memref.load %arg2[%40, %41] : memref<2x16xi32, #tpu.memory_space<smem>>
      %c0_i32_22 = arith.constant 0 : i32
      %43 = tpu.memref_slice %arg3[%42, %c0_i32_22] : memref<64x128xf32, #tpu.memory_space<any>> -> memref<1x128xf32, #tpu.memory_space<any>>
      %c0_i32_23 = arith.constant 0 : i32
      %44 = tpu.memref_slice %arg8[%37, %c0_i32_21, %c0_i32_23] : memref<2x8x128xf32, #tpu.memory_space<vmem>> -> memref<1x1x128xf32, #tpu.memory_space<vmem>>
      %45 = tpu.memref_squeeze %44 : memref<1x1x128xf32, #tpu.memory_space<vmem>> -> memref<1x128xf32, #tpu.memory_space<vmem>>
      %46 = tpu.memref_slice %arg9[%37] : memref<2x!tpu.dma_semaphore, #tpu.memory_space<semaphore_mem>> -> memref<1x!tpu.dma_semaphore, #tpu.memory_space<semaphore_mem>>
      %47 = tpu.memref_squeeze %46 : memref<1x!tpu.dma_semaphore, #tpu.memory_space<semaphore_mem>> -> memref<!tpu.dma_semaphore, #tpu.memory_space<semaphore_mem>>
      tpu.enqueue_dma source(%43 : memref<1x128xf32, #tpu.memory_space<any>>) target(%45 : memref<1x128xf32, #tpu.memory_space<vmem>>) target_semaphore(%47 : memref<!tpu.dma_semaphore, #tpu.memory_space<semaphore_mem>>)
      %c1_i32_24 = arith.constant 1 : i32
      %48 = arith.addi %38, %c1_i32_24 : i32
      %49 = arith.index_cast %arg0 : i32 to index
      %50 = arith.index_cast %48 : i32 to index
      %51 = memref.load %arg2[%49, %50] : memref<2x16xi32, #tpu.memory_space<smem>>
      %c0_i32_25 = arith.constant 0 : i32
      %52 = tpu.memref_slice %arg3[%51, %c0_i32_25] : memref<64x128xf32, #tpu.memory_space<any>> -> memref<1x128xf32, #tpu.memory_space<any>>
      %c0_i32_26 = arith.constant 0 : i32
      %53 = tpu.memref_slice %arg8[%37, %c1_i32_24, %c0_i32_26] : memref<2x8x128xf32, #tpu.memory_space<vmem>> -> memref<1x1x128xf32, #tpu.memory_space<vmem>>
      %54 = tpu.memref_squeeze %53 : memref<1x1x128xf32, #tpu.memory_space<vmem>> -> memref<1x128xf32, #tpu.memory_space<vmem>>
      %55 = tpu.memref_slice %arg9[%37] : memref<2x!tpu.dma_semaphore, #tpu.memory_space<semaphore_mem>> -> memref<1x!tpu.dma_semaphore, #tpu.memory_space<semaphore_mem>>
      %56 = tpu.memref_squeeze %55 : memref<1x!tpu.dma_semaphore, #tpu.memory_space<semaphore_mem>> -> memref<!tpu.dma_semaphore, #tpu.memory_space<semaphore_mem>>
      tpu.enqueue_dma source(%52 : memref<1x128xf32, #tpu.memory_space<any>>) target(%54 : memref<1x128xf32, #tpu.memory_space<vmem>>) target_semaphore(%56 : memref<!tpu.dma_semaphore, #tpu.memory_space<semaphore_mem>>)
      %c2_i32_27 = arith.constant 2 : i32
      %57 = arith.addi %38, %c2_i32_27 : i32
      %58 = arith.index_cast %arg0 : i32 to index
      %59 = arith.index_cast %57 : i32 to index
      %60 = memref.load %arg2[%58, %59] : memref<2x16xi32, #tpu.memory_space<smem>>
      %c0_i32_28 = arith.constant 0 : i32
      %61 = tpu.memref_slice %arg3[%60, %c0_i32_28] : memref<64x128xf32, #tpu.memory_space<any>> -> memref<1x128xf32, #tpu.memory_space<any>>
      %c0_i32_29 = arith.constant 0 : i32
      %62 = tpu.memref_slice %arg8[%37, %c2_i32_27, %c0_i32_29] : memref<2x8x128xf32, #tpu.memory_space<vmem>> -> memref<1x1x128xf32, #tpu.memory_space<vmem>>
      %63 = tpu.memref_squeeze %62 : memref<1x1x128xf32, #tpu.memory_space<vmem>> -> memref<1x128xf32, #tpu.memory_space<vmem>>
      %64 = tpu.memref_slice %arg9[%37] : memref<2x!tpu.dma_semaphore, #tpu.memory_space<semaphore_mem>> -> memref<1x!tpu.dma_semaphore, #tpu.memory_space<semaphore_mem>>
      %65 = tpu.memref_squeeze %64 : memref<1x!tpu.dma_semaphore, #tpu.memory_space<semaphore_mem>> -> memref<!tpu.dma_semaphore, #tpu.memory_space<semaphore_mem>>
      tpu.enqueue_dma source(%61 : memref<1x128xf32, #tpu.memory_space<any>>) target(%63 : memref<1x128xf32, #tpu.memory_space<vmem>>) target_semaphore(%65 : memref<!tpu.dma_semaphore, #tpu.memory_space<semaphore_mem>>)
      %c3_i32 = arith.constant 3 : i32
      %66 = arith.addi %38, %c3_i32 : i32
      %67 = arith.index_cast %arg0 : i32 to index
      %68 = arith.index_cast %66 : i32 to index
      %69 = memref.load %arg2[%67, %68] : memref<2x16xi32, #tpu.memory_space<smem>>
      %c0_i32_30 = arith.constant 0 : i32
      %70 = tpu.memref_slice %arg3[%69, %c0_i32_30] : memref<64x128xf32, #tpu.memory_space<any>> -> memref<1x128xf32, #tpu.memory_space<any>>
      %c0_i32_31 = arith.constant 0 : i32
      %71 = tpu.memref_slice %arg8[%37, %c3_i32, %c0_i32_31] : memref<2x8x128xf32, #tpu.memory_space<vmem>> -> memref<1x1x128xf32, #tpu.memory_space<vmem>>
      %72 = tpu.memref_squeeze %71 : memref<1x1x128xf32, #tpu.memory_space<vmem>> -> memref<1x128xf32, #tpu.memory_space<vmem>>
      %73 = tpu.memref_slice %arg9[%37] : memref<2x!tpu.dma_semaphore, #tpu.memory_space<semaphore_mem>> -> memref<1x!tpu.dma_semaphore, #tpu.memory_space<semaphore_mem>>
      %74 = tpu.memref_squeeze %73 : memref<1x!tpu.dma_semaphore, #tpu.memory_space<semaphore_mem>> -> memref<!tpu.dma_semaphore, #tpu.memory_space<semaphore_mem>>
      tpu.enqueue_dma source(%70 : memref<1x128xf32, #tpu.memory_space<any>>) target(%72 : memref<1x128xf32, #tpu.memory_space<vmem>>) target_semaphore(%74 : memref<!tpu.dma_semaphore, #tpu.memory_space<semaphore_mem>>)
      %c4_i32 = arith.constant 4 : i32
      %75 = arith.addi %38, %c4_i32 : i32
      %76 = arith.index_cast %arg0 : i32 to index
      %77 = arith.index_cast %75 : i32 to index
      %78 = memref.load %arg2[%76, %77] : memref<2x16xi32, #tpu.memory_space<smem>>
      %c0_i32_32 = arith.constant 0 : i32
      %79 = tpu.memref_slice %arg3[%78, %c0_i32_32] : memref<64x128xf32, #tpu.memory_space<any>> -> memref<1x128xf32, #tpu.memory_space<any>>
      %c0_i32_33 = arith.constant 0 : i32
      %80 = tpu.memref_slice %arg8[%37, %c4_i32, %c0_i32_33] : memref<2x8x128xf32, #tpu.memory_space<vmem>> -> memref<1x1x128xf32, #tpu.memory_space<vmem>>
      %81 = tpu.memref_squeeze %80 : memref<1x1x128xf32, #tpu.memory_space<vmem>> -> memref<1x128xf32, #tpu.memory_space<vmem>>
      %82 = tpu.memref_slice %arg9[%37] : memref<2x!tpu.dma_semaphore, #tpu.memory_space<semaphore_mem>> -> memref<1x!tpu.dma_semaphore, #tpu.memory_space<semaphore_mem>>
      %83 = tpu.memref_squeeze %82 : memref<1x!tpu.dma_semaphore, #tpu.memory_space<semaphore_mem>> -> memref<!tpu.dma_semaphore, #tpu.memory_space<semaphore_mem>>
      tpu.enqueue_dma source(%79 : memref<1x128xf32, #tpu.memory_space<any>>) target(%81 : memref<1x128xf32, #tpu.memory_space<vmem>>) target_semaphore(%83 : memref<!tpu.dma_semaphore, #tpu.memory_space<semaphore_mem>>)
      %c5_i32 = arith.constant 5 : i32
      %84 = arith.addi %38, %c5_i32 : i32
      %85 = arith.index_cast %arg0 : i32 to index
      %86 = arith.index_cast %84 : i32 to index
      %87 = memref.load %arg2[%85, %86] : memref<2x16xi32, #tpu.memory_space<smem>>
      %c0_i32_34 = arith.constant 0 : i32
      %88 = tpu.memref_slice %arg3[%87, %c0_i32_34] : memref<64x128xf32, #tpu.memory_space<any>> -> memref<1x128xf32, #tpu.memory_space<any>>
      %c0_i32_35 = arith.constant 0 : i32
      %89 = tpu.memref_slice %arg8[%37, %c5_i32, %c0_i32_35] : memref<2x8x128xf32, #tpu.memory_space<vmem>> -> memref<1x1x128xf32, #tpu.memory_space<vmem>>
      %90 = tpu.memref_squeeze %89 : memref<1x1x128xf32, #tpu.memory_space<vmem>> -> memref<1x128xf32, #tpu.memory_space<vmem>>
      %91 = tpu.memref_slice %arg9[%37] : memref<2x!tpu.dma_semaphore, #tpu.memory_space<semaphore_mem>> -> memref<1x!tpu.dma_semaphore, #tpu.memory_space<semaphore_mem>>
      %92 = tpu.memref_squeeze %91 : memref<1x!tpu.dma_semaphore, #tpu.memory_space<semaphore_mem>> -> memref<!tpu.dma_semaphore, #tpu.memory_space<semaphore_mem>>
      tpu.enqueue_dma source(%88 : memref<1x128xf32, #tpu.memory_space<any>>) target(%90 : memref<1x128xf32, #tpu.memory_space<vmem>>) target_semaphore(%92 : memref<!tpu.dma_semaphore, #tpu.memory_space<semaphore_mem>>)
      %c6_i32 = arith.constant 6 : i32
      %93 = arith.addi %38, %c6_i32 : i32
      %94 = arith.index_cast %arg0 : i32 to index
      %95 = arith.index_cast %93 : i32 to index
      %96 = memref.load %arg2[%94, %95] : memref<2x16xi32, #tpu.memory_space<smem>>
      %c0_i32_36 = arith.constant 0 : i32
      %97 = tpu.memref_slice %arg3[%96, %c0_i32_36] : memref<64x128xf32, #tpu.memory_space<any>> -> memref<1x128xf32, #tpu.memory_space<any>>
      %c0_i32_37 = arith.constant 0 : i32
      %98 = tpu.memref_slice %arg8[%37, %c6_i32, %c0_i32_37] : memref<2x8x128xf32, #tpu.memory_space<vmem>> -> memref<1x1x128xf32, #tpu.memory_space<vmem>>
      %99 = tpu.memref_squeeze %98 : memref<1x1x128xf32, #tpu.memory_space<vmem>> -> memref<1x128xf32, #tpu.memory_space<vmem>>
      %100 = tpu.memref_slice %arg9[%37] : memref<2x!tpu.dma_semaphore, #tpu.memory_space<semaphore_mem>> -> memref<1x!tpu.dma_semaphore, #tpu.memory_space<semaphore_mem>>
      %101 = tpu.memref_squeeze %100 : memref<1x!tpu.dma_semaphore, #tpu.memory_space<semaphore_mem>> -> memref<!tpu.dma_semaphore, #tpu.memory_space<semaphore_mem>>
      tpu.enqueue_dma source(%97 : memref<1x128xf32, #tpu.memory_space<any>>) target(%99 : memref<1x128xf32, #tpu.memory_space<vmem>>) target_semaphore(%101 : memref<!tpu.dma_semaphore, #tpu.memory_space<semaphore_mem>>)
      %c7_i32 = arith.constant 7 : i32
      %102 = arith.addi %38, %c7_i32 : i32
      %103 = arith.index_cast %arg0 : i32 to index
      %104 = arith.index_cast %102 : i32 to index
      %105 = memref.load %arg2[%103, %104] : memref<2x16xi32, #tpu.memory_space<smem>>
      %c0_i32_38 = arith.constant 0 : i32
      %106 = tpu.memref_slice %arg3[%105, %c0_i32_38] : memref<64x128xf32, #tpu.memory_space<any>> -> memref<1x128xf32, #tpu.memory_space<any>>
      %c0_i32_39 = arith.constant 0 : i32
      %107 = tpu.memref_slice %arg8[%37, %c7_i32, %c0_i32_39] : memref<2x8x128xf32, #tpu.memory_space<vmem>> -> memref<1x1x128xf32, #tpu.memory_space<vmem>>
      %108 = tpu.memref_squeeze %107 : memref<1x1x128xf32, #tpu.memory_space<vmem>> -> memref<1x128xf32, #tpu.memory_space<vmem>>
      %109 = tpu.memref_slice %arg9[%37] : memref<2x!tpu.dma_semaphore, #tpu.memory_space<semaphore_mem>> -> memref<1x!tpu.dma_semaphore, #tpu.memory_space<semaphore_mem>>
      %110 = tpu.memref_squeeze %109 : memref<1x!tpu.dma_semaphore, #tpu.memory_space<semaphore_mem>> -> memref<!tpu.dma_semaphore, #tpu.memory_space<semaphore_mem>>
      tpu.enqueue_dma source(%106 : memref<1x128xf32, #tpu.memory_space<any>>) target(%108 : memref<1x128xf32, #tpu.memory_space<vmem>>) target_semaphore(%110 : memref<!tpu.dma_semaphore, #tpu.memory_space<semaphore_mem>>)
      %c8_i32_40 = arith.constant 8 : i32
    } else {
    }
    %c0_i32_3 = arith.constant 0 : i32
    %c0_i32_4 = arith.constant 0 : i32
    %8 = tpu.memref_slice %arg8[%0, %c0_i32_3, %c0_i32_4] : memref<2x8x128xf32, #tpu.memory_space<vmem>> -> memref<1x8x128xf32, #tpu.memory_space<vmem>>
    %9 = tpu.memref_squeeze %8 : memref<1x8x128xf32, #tpu.memory_space<vmem>> -> memref<8x128xf32, #tpu.memory_space<vmem>>
    %c0_i32_5 = arith.constant 0 : i32
    %c0_i32_6 = arith.constant 0 : i32
    %10 = tpu.memref_slice %arg8[%0, %c0_i32_5, %c0_i32_6] : memref<2x8x128xf32, #tpu.memory_space<vmem>> -> memref<1x8x128xf32, #tpu.memory_space<vmem>>
    %11 = tpu.memref_squeeze %10 : memref<1x8x128xf32, #tpu.memory_space<vmem>> -> memref<8x128xf32, #tpu.memory_space<vmem>>
    %12 = tpu.memref_slice %arg9[%0] : memref<2x!tpu.dma_semaphore, #tpu.memory_space<semaphore_mem>> -> memref<1x!tpu.dma_semaphore, #tpu.memory_space<semaphore_mem>>
    %13 = tpu.memref_squeeze %12 : memref<1x!tpu.dma_semaphore, #tpu.memory_space<semaphore_mem>> -> memref<!tpu.dma_semaphore, #tpu.memory_space<semaphore_mem>>
    tpu.wait_dma2 semaphore(%13 : memref<!tpu.dma_semaphore, #tpu.memory_space<semaphore_mem>>) src(%9 : memref<8x128xf32, #tpu.memory_space<vmem>>) dst(%11 : memref<8x128xf32, #tpu.memory_space<vmem>>)
    %c8_i32 = arith.constant 8 : i32
    %14 = arith.muli %arg1, %c8_i32 : i32
    %15 = tpu.assume_multiple %14, 8 : i32
    %16 = arith.index_cast %0 : i32 to index
    %c0 = arith.constant 0 : index
    %c0_7 = arith.constant 0 : index
    %17 = vector.load %arg8[%16, %c0, %c0_7] : memref<2x8x128xf32, #tpu.memory_space<vmem>>, vector<1x8x128xf32>
    %18 = vector.shape_cast %17 : vector<1x8x128xf32> to vector<8x128xf32>
    %19 = arith.index_cast %15 : i32 to index
    %c0_8 = arith.constant 0 : index
    %20 = vector.load %arg4[%19, %c0_8] : memref<16x128xf32, #tpu.memory_space<vmem>>, vector<8x128xf32>
    %c0_9 = arith.constant 0 : index
    %c0_10 = arith.constant 0 : index
    %21 = vector.load %arg5[%c0_9, %c0_10] : memref<2x128xf32, #tpu.memory_space<vmem>>, vector<1x128xf32>
    %c1 = arith.constant 1 : index
    %c0_11 = arith.constant 0 : index
    %22 = vector.load %arg5[%c1, %c0_11] : memref<2x128xf32, #tpu.memory_space<vmem>>, vector<1x128xf32>
    %c0_12 = arith.constant 0 : index
    %c0_13 = arith.constant 0 : index
    %c0_14 = arith.constant 0 : index
    %23 = vector.load %arg6[%c0_12, %c0_13, %c0_14] : memref<1x8x1xf32, #tpu.memory_space<vmem>>, vector<1x8x1xf32>
    %24 = vector.shape_cast %23 : vector<1x8x1xf32> to vector<8x1xf32>
    %25 = arith.subf %22, %21 : vector<1x128xf32>
    %26 = vector.broadcast %24 : vector<8x1xf32> to vector<8x128xf32>
    %27 = vector.broadcast %25 : vector<1x128xf32> to vector<8x128xf32>
    %28 = arith.mulf %26, %27 : vector<8x128xf32>
    %29 = vector.broadcast %21 : vector<1x128xf32> to vector<8x128xf32>
    %30 = arith.addf %29, %28 : vector<8x128xf32>
    %31 = arith.addf %18, %20 : vector<8x128xf32>
    %32 = arith.addf %31, %30 : vector<8x128xf32>
    %c0_15 = arith.constant 0 : index
    %c0_16 = arith.constant 0 : index
    %c0_17 = arith.constant 0 : index
    %33 = vector.load %arg7[%c0_15, %c0_16, %c0_17] : memref<1x8x128xf32, #tpu.memory_space<vmem>>, vector<1x8x128xf32>
    %34 = vector.shape_cast %33 : vector<1x8x128xf32> to vector<8x128xf32>
    %35 = vector.shape_cast %32 : vector<8x128xf32> to vector<1x8x128xf32>
    tpu.vector_store %arg7[%c0_15, %c0_16, %c0_17], %35 {strides = array<i32>} : memref<1x8x128xf32, #tpu.memory_space<vmem>>, vector<1x8x128xf32>,
    return
  }
  func.func @transform_1(%arg0: i32, %arg1: i32, %arg2: memref<2x16xi32, #tpu.memory_space<smem>>) -> (i32, i32) {
    %c0_i32 = arith.constant 0 : i32
    %c0_i32_0 = arith.constant 0 : i32
    %c0_i32_1 = arith.constant 0 : i32
    return %c0_i32, %c0_i32_0 : i32, i32
  }
  func.func @transform_2(%arg0: i32, %arg1: i32, %arg2: memref<2x16xi32, #tpu.memory_space<smem>>) -> (i32, i32) {
    %c0_i32 = arith.constant 0 : i32
    %c0_i32_0 = arith.constant 0 : i32
    %c0_i32_1 = arith.constant 0 : i32
    return %c0_i32, %c0_i32_0 : i32, i32
  }
  func.func @transform_3(%arg0: i32, %arg1: i32, %arg2: memref<2x16xi32, #tpu.memory_space<smem>>) -> (i32, i32, i32) {
    %c0_i32 = arith.constant 0 : i32
    %c0_i32_0 = arith.constant 0 : i32
    return %arg0, %arg1, %c0_i32 : i32, i32, i32
  }
  func.func @transform_4(%arg0: i32, %arg1: i32, %arg2: memref<2x16xi32, #tpu.memory_space<smem>>) -> (i32, i32, i32) {
    %c0_i32 = arith.constant 0 : i32
    %c0_i32_0 = arith.constant 0 : i32
    return %arg0, %arg1, %c0_i32 : i32, i32, i32
  }
}

</mosaic_0001>

<llo_original>
// kernel: tpu_custom_call.1
$region0: #{tpu_custom_call.1}
  #allocation0 [shape = 'u32[]', space=smem, size = 0x4, offset = 0x4, fixed_abs, tag = 'smem constant byte address 0x4 - core index']
  #allocation1 [shape = 'u32[144,128]{1,0:T(1,128)}', space=vmem, size = 0x12000, scoped, tag = 'internal scratch']
  #allocation2 [shape = 'f32[2,8,128]{2,1,0:T(8,128)}', space=vmem, size = 0x2000, scoped, tag = 'scratch operand']
  #allocation3 [shape = 's32[2]{0}', space=sflag, size = 0x8, scoped, tag = 'scratch operand']
  #allocation4 [shape = 's32[1]{0}', space=sflag, size = 0x4, scoped, tag = 'scoped memory for tpu_custom_call.1']
  #allocation5 [shape = 'u8[1024]{0}', space=smem, size = 0x400, scoped, tag = 'prefetched SMEM operand 0']
  #allocation8 [shape = 's32[]', space=sflag, size = 0x4, offset = 0, fixed_abs, tag = 'sflag constant byte address 0x0 - dummy sync flag']
  #allocation9 [shape = 's32[]', space=sflag, size = 0x4, offset = 0, fixed_abs, tag = 'sflag constant byte address 0x0 - dummy sync flag']
  #allocation10 [shape = 'u32[]', space=smem, size = 0x4, offset = 0x44, fixed_abs, tag = 'smem constant byte address 0x44 - assertion arg 0']
  #allocation11 [shape = 'u32[]', space=smem, size = 0x4, offset = 0x48, fixed_abs, tag = 'smem constant byte address 0x48 - assertion arg 1']
  #allocation12 [shape = 's32[]', space=sflag, size = 0x4, offset = 0, fixed_abs, tag = 'sflag constant byte address 0x0 - dummy sync flag']
  #allocation13 [shape = 's32[]', space=sflag, size = 0x4, offset = 0, fixed_abs, tag = 'sflag constant byte address 0x0 - dummy sync flag']
  #allocation14 [shape = 's32[]', space=sflag, size = 0x4, offset = 0, fixed_abs, tag = 'sflag constant byte address 0x0 - dummy sync flag']
  #allocation15 [shape = 's32[]', space=sflag, size = 0x4, offset = 0, fixed_abs, tag = 'sflag constant byte address 0x0 - dummy sync flag']
  #allocation16 [shape = 's32[]', space=sflag, size = 0x4, offset = 0, fixed_abs, tag = 'sflag constant byte address 0x0 - dummy sync flag']
  #allocation17 [shape = 's32[]', space=sflag, size = 0x4, offset = 0, fixed_abs, tag = 'sflag constant byte address 0x0 - dummy sync flag']
  #allocation18 [shape = 's32[]', space=sflag, size = 0x4, offset = 0, fixed_abs, tag = 'sflag constant byte address 0x0 - dummy sync flag']
  #allocation19 [shape = 's32[]', space=sflag, size = 0x4, offset = 0, fixed_abs, tag = 'sflag constant byte address 0x0 - dummy sync flag']
  #allocation20 [shape = 's32[]', space=sflag, size = 0x4, offset = 0, fixed_abs, tag = 'sflag constant byte address 0x0 - dummy sync flag']
  #allocation21 [shape = 's32[]', space=sflag, size = 0x4, offset = 0, fixed_abs, tag = 'sflag constant byte address 0x0 - dummy sync flag']
  #allocation22 [shape = 's32[]', space=sflag, size = 0x4, offset = 0, fixed_abs, tag = 'sflag constant byte address 0x0 - dummy sync flag']
  #allocation23 [shape = 's32[]', space=sflag, size = 0x4, offset = 0, fixed_abs, tag = 'sflag constant byte address 0x0 - dummy sync flag']
  #allocation24 [shape = 's32[]', space=sflag, size = 0x4, offset = 0, fixed_abs, tag = 'sflag constant byte address 0x0 - dummy sync flag']
  #allocation25 [shape = 's32[]', space=sflag, size = 0x4, offset = 0, fixed_abs, tag = 'sflag constant byte address 0x0 - dummy sync flag']
  #allocation26 [shape = 's32[]', space=sflag, size = 0x4, offset = 0, fixed_abs, tag = 'sflag constant byte address 0x0 - dummy sync flag']
  #allocation27 [shape = 's32[]', space=sflag, size = 0x4, offset = 0, fixed_abs, tag = 'sflag constant byte address 0x0 - dummy sync flag']
  #allocation28 [shape = 's32[]', space=sflag, size = 0x4, offset = 0, fixed_abs, tag = 'sflag constant byte address 0x0 - dummy sync flag']
  #allocation29 [shape = 's32[]', space=sflag, size = 0x4, offset = 0, fixed_abs, tag = 'sflag constant byte address 0x0 - dummy sync flag']
  #allocation30 [shape = 's32[]', space=sflag, size = 0x4, offset = 0, fixed_abs, tag = 'sflag constant byte address 0x0 - dummy sync flag']
  #allocation31 [shape = 's32[]', space=sflag, size = 0x4, offset = 0, fixed_abs, tag = 'sflag constant byte address 0x0 - dummy sync flag']
  #allocation32 [shape = 's32[]', space=sflag, size = 0x4, offset = 0, fixed_abs, tag = 'sflag constant byte address 0x0 - dummy sync flag']
  #allocation33 [shape = 's32[]', space=sflag, size = 0x4, offset = 0, fixed_abs, tag = 'sflag constant byte address 0x0 - dummy sync flag']
  #allocation34 [shape = 's32[]', space=sflag, size = 0x4, offset = 0, fixed_abs, tag = 'sflag constant byte address 0x0 - dummy sync flag']
  #allocation35 [shape = 's32[]', space=sflag, size = 0x4, offset = 0, fixed_abs, tag = 'sflag constant byte address 0x0 - dummy sync flag']
  #allocation36 [shape = 's32[]', space=sflag, size = 0x4, offset = 0, fixed_abs, tag = 'sflag constant byte address 0x0 - dummy sync flag']
  #allocation37 [shape = 's32[]', space=sflag, size = 0x4, offset = 0, fixed_abs, tag = 'sflag constant byte address 0x0 - dummy sync flag']
  #allocation38 [shape = 's32[]', space=sflag, size = 0x4, offset = 0, fixed_abs, tag = 'sflag constant byte address 0x0 - dummy sync flag']
  #allocation39 [shape = 's32[]', space=sflag, size = 0x4, offset = 0, fixed_abs, tag = 'sflag constant byte address 0x0 - dummy sync flag']
  #allocation40 [shape = 's32[]', space=sflag, size = 0x4, offset = 0, fixed_abs, tag = 'sflag constant byte address 0x0 - dummy sync flag']
  #allocation41 [shape = 's32[]', space=sflag, size = 0x4, offset = 0, fixed_abs, tag = 'sflag constant byte address 0x0 - dummy sync flag']
  %s0 = inlined_call_operand.vmem [shape: s32[2,16], index: 0, kind: input, shape index: {}]
  %s1 = inlined_call_operand.hbm [shape: f32[64,128], index: 1, kind: input, shape index: {}]
  %s2 = inlined_call_operand.vmem [shape: f32[16,128], index: 2, kind: input, shape index: {}]
  %s3 = inlined_call_operand.vmem [shape: f32[2,128], index: 3, kind: input, shape index: {}]
  %s4 = inlined_call_operand.vmem [shape: f32[2,16,1], index: 4, kind: input, shape index: {}]
  %s5 = inlined_call_operand.hbm [shape: f32[2,16,128], index: 5, kind: output, shape index: {}]
  %s6 = sld [smem:[#allocation0]]
  $region117: #{tpu_custom_call.1} parent=0
    _
  %s8 = ssub.s32 1, %s6
  %s9 = scalar_select 0, %s8, %s6
  %s10 = sshll.u32 %s0, 4
  %s11 = int_to_ptr.vmem [resolvable:$true] %s10
  %13 = dma.vmem_to_smem %s11, 32, [#allocation5], [#allocation4]
  %14 = dma.done [#allocation4], 32
  %15 = sfence
  $region1: #{tpu_custom_call.1} parent=0
    #allocation6 [shape = 'u8[8192]{0}', space=vmem, size = 0x2000, scoped, tag = 'output window, operand 0']
    #allocation7 [shape = 's32[2]{0}', space=sflag, size = 0x8, scoped, tag = 'scoped memory for tpu_custom_call.1']
    %16 = vsyncpa [#allocation7], 0
    %s17 = scalar_lea.sflag [#allocation7], 1
    %18 = vsyncpa %s17, 0
    loop: start=0, step=1, limit=6
    $region2: #{tpu_custom_call.1} parent=1 // loop_pre_header
      _
    $region3: #{tpu_custom_call.1} parent=1 // loop_header
      %s20 = sphi 0, %s24
      %p21 = scmp.ge.s32.totalorder %s20, 6
      %s27 = sphi 0, %s39
      %s28 = sphi 0, %s35
      %s29 = sphi 0, %s27
      %s30 = sphi 0, %s28
      %s31 = sphi 0, %s29
      %s32 = sphi 0, %s30
      %s40 = sphi 0, %s40
      %s42 = sphi 0, %s40
      %s43 = sphi 0, %s42
      %s57 = sphi 0, %s43
      %s61 = sphi 0, %s61
      %s63 = sphi 0, %s61
      %s64 = sphi 0, %s63
      %s78 = sphi 0, %s64
      %s86 = sphi 0, %s88
      %s89 = sphi 0, %s86
      %s90 = sphi 0, %s89
      %s106 = sphi 0, %s90
      %s114 = sphi 0, %s116
      %s117 = sphi 0, %s114
      %s118 = sphi 0, %s117
      %s134 = sphi 0, %s118
    $region4: #{tpu_custom_call.1} parent=1 // loop_header_branch
      %23 = sbr.rel (%p21) target = $region8
    $region5: #{tpu_custom_call.1} parent=1 // loop_body
      %s25 = ssub.s32 %s20, 1
      %s26 = ssub.s32 %s20, 2
      %s33 = sadd.s32 1, %s28
      %p34 = scmp.ge.s32.totalorder %s33, 2
      %s35 = scalar_select %p34, 0, %s33
      %s36 = sadd.s32 1, %s27
      %s37 = scalar_select %p34, %s36, %s27
      %p38 = scmp.ge.s32.totalorder %s37, 2
      %s39 = scalar_select %p38, 0, %s37
      %s41 = sadd.s32 %s40, 1
      %p44 = scmp.eq.s32.totalorder %s20, 3
      %p45 = scmp.ne.s32.totalorder %s40, %s42
      %p46 = scmp.eq.s32.totalorder %s20, 0
      %p47 = por %p45, %p46
      %p48 = scmp.ne.s32.totalorder %s40, %s42
      %p49 = scmp.eq.s32.totalorder %s25, 3
      %p50 = por %p48, %p49
      %p51 = scmp.ne.s32.totalorder %s42, %s43
      %p52 = scmp.eq.s32.totalorder %s25, 0
      %p53 = por %p51, %p52
      %p54 = scmp.ne.s32.totalorder %s42, %s43
      %p55 = scmp.eq.s32.totalorder %s26, 3
      %p56 = por %p54, %p55
      %p58 = scmp.ne.s32.totalorder %s43, %s57
      %p59 = scmp.eq.s32.totalorder %s26, 0
      %p60 = por %p58, %p59
      %s62 = sadd.s32 %s61, 1
      %p65 = scmp.eq.s32.totalorder %s20, 3
      %p66 = scmp.ne.s32.totalorder %s61, %s63
      %p67 = scmp.eq.s32.totalorder %s20, 0
      %p68 = por %p66, %p67
      %p69 = scmp.ne.s32.totalorder %s61, %s63
      %p70 = scmp.eq.s32.totalorder %s25, 3
      %p71 = por %p69, %p70
      %p72 = scmp.ne.s32.totalorder %s63, %s64
      %p73 = scmp.eq.s32.totalorder %s25, 0
      %p74 = por %p72, %p73
      %p75 = scmp.ne.s32.totalorder %s63, %s64
      %p76 = scmp.eq.s32.totalorder %s26, 3
      %p77 = por %p75, %p76
      %p79 = scmp.ne.s32.totalorder %s64, %s78
      %p80 = scmp.eq.s32.totalorder %s26, 0
      %p81 = por %p79, %p80
      %s82 = ssub.s32 %s27, %s39
      %s83 = ssub.s32 %s28, %s35
      %s84 = sor.u32 %s82, %s83
      %p85 = scmp.eq.s32.totalorder %s84, 0
      %s87 = sadd.s32 %s86, 1
      %s88 = scalar_select %p85, %s86, %s87
      %p91 = pneg %p85
      %p92 = scmp.eq.s32.totalorder %s20, 3
      %p93 = por %p91, %p92
      %p94 = scmp.ne.s32.totalorder %s86, %s89
      %p95 = scmp.eq.s32.totalorder %s20, 0
      %p96 = por %p94, %p95
      %p97 = scmp.ne.s32.totalorder %s86, %s89
      %p98 = scmp.eq.s32.totalorder %s25, 3
      %p99 = por %p97, %p98
      %p100 = scmp.ne.s32.totalorder %s89, %s90
      %p101 = scmp.eq.s32.totalorder %s25, 0
      %p102 = por %p100, %p101
      %p103 = scmp.ne.s32.totalorder %s89, %s90
      %p104 = scmp.eq.s32.totalorder %s26, 3
      %p105 = por %p103, %p104
      %p107 = scmp.ne.s32.totalorder %s90, %s106
      %p108 = scmp.eq.s32.totalorder %s26, 0
      %p109 = por %p107, %p108
      %s110 = ssub.s32 %s27, %s39
      %s111 = ssub.s32 %s28, %s35
      %s112 = sor.u32 %s110, %s111
      %p113 = scmp.eq.s32.totalorder %s112, 0
      %s115 = sadd.s32 %s114, 1
      %s116 = scalar_select %p113, %s114, %s115
      %p119 = pneg %p113
      %p120 = scmp.eq.s32.totalorder %s20, 3
      %p121 = por %p119, %p120
      %p122 = scmp.ne.s32.totalorder %s114, %s117
      %p123 = scmp.eq.s32.totalorder %s20, 0
      %p124 = por %p122, %p123
      %p125 = scmp.ne.s32.totalorder %s114, %s117
      %p126 = scmp.eq.s32.totalorder %s25, 3
      %p127 = por %p125, %p126
      %p128 = scmp.ne.s32.totalorder %s117, %s118
      %p129 = scmp.eq.s32.totalorder %s25, 0
      %p130 = por %p128, %p129
      %p131 = scmp.ne.s32.totalorder %s117, %s118
      %p132 = scmp.eq.s32.totalorder %s26, 3
      %p133 = por %p131, %p132
      %p135 = scmp.ne.s32.totalorder %s118, %s134
      %p136 = scmp.eq.s32.totalorder %s26, 0
      %p137 = por %p135, %p136
      %p138 = scmp.le.s32.totalorder 1, %s20
      %p139 = scmp.lt.s32.totalorder %s20, 5
      %p140 = pnand %p138, %p139
      %p141 = pneg %p140
      // Predicated region
      $region9: #{tpu_custom_call.1} parent=5 // pred_check
        _
      $region10: #{tpu_custom_call.1} parent=5 // pred_check_branch
        %143 = sbr.rel (%p140) target = $region12
      $region11: #{tpu_custom_call.1} parent=5 // pred_region
        %s144 = ssub.s32 %s20, 1
        // Predicated region
        $region13: #{tpu_custom_call.1} parent=11 // pred_check
          %p145 = pneg %p53
        $region14: #{tpu_custom_call.1} parent=11 // pred_check_branch
          %147 = sbr.rel (%p145) target = $region16
        $region15: #{tpu_custom_call.1} parent=11 // pred_region
          _
        $region16: #{tpu_custom_call.1} parent=11 // pred_fallthru
          _
        // Predicated region
        $region17: #{tpu_custom_call.1} parent=11 // pred_check
          %p148 = pneg %p74
        $region18: #{tpu_custom_call.1} parent=11 // pred_check_branch
          %150 = sbr.rel (%p148) target = $region20
        $region19: #{tpu_custom_call.1} parent=11 // pred_region
          _
        $region20: #{tpu_custom_call.1} parent=11 // pred_fallthru
          _
      $region12: #{tpu_custom_call.1} parent=5 // pred_fallthru
        _
      %p151 = scmp.lt.s32.totalorder %s20, 4
      // Predicated region
      $region21: #{tpu_custom_call.1} parent=5 // pred_check
        %p152 = pneg %p151
      $region22: #{tpu_custom_call.1} parent=5 // pred_check_branch
        %154 = sbr.rel (%p152) target = $region24
      $region23: #{tpu_custom_call.1} parent=5 // pred_region
        // Predicated region
        $region25: #{tpu_custom_call.1} parent=23 // pred_check
          %p155 = pneg %p96
        $region26: #{tpu_custom_call.1} parent=23 // pred_check_branch
          %157 = sbr.rel (%p155) target = $region28
        $region27: #{tpu_custom_call.1} parent=23 // pred_region
          %p158 = scmp.lt.s32.totalorder %s27, 1
          %s159 = scalar_select %p158, %s27, 1
          %p160 = scmp.lt.s32.totalorder %s28, 1
          %s161 = scalar_select %p160, %s28, 1
          %s162 = smul.addr %s159, 2
          %s163 = sadd.s32 %s161, %s162
          %s164 = smul.addr %s163, 8
          %s165 = scalar_lea.vmem %s4, %s164
        $region28: #{tpu_custom_call.1} parent=23 // pred_fallthru
          _
      $region24: #{tpu_custom_call.1} parent=5 // pred_fallthru
        _
      %p166 = scmp.le.s32.totalorder 1, %s20
      %p167 = scmp.lt.s32.totalorder %s20, 5
      %p168 = pnand %p166, %p167
      %p169 = pneg %p168
      // Predicated region
      $region29: #{tpu_custom_call.1} parent=5 // pred_check
        _
      $region30: #{tpu_custom_call.1} parent=5 // pred_check_branch
        %171 = sbr.rel (%p168) target = $region32
      $region31: #{tpu_custom_call.1} parent=5 // pred_region
        %s172 = ssub.s32 %s20, 1
        %p173 = pneg %p53
        %p174 = pneg %p50
        %p175 = pneg %p74
        %p176 = pneg %p71
        %p177 = scmp.lt.s32.totalorder %s29, 1
        %s178 = scalar_select %p177, %s29, 1
        %p179 = scmp.lt.s32.totalorder %s30, 1
        %s180 = scalar_select %p179, %s30, 1
        %s181 = smul.addr %s178, 2
        %s182 = sadd.s32 %s180, %s181
        %s183 = smul.addr %s182, 8
        %s184 = scalar_lea.vmem %s4, %s183
        %p185 = pneg %p102
        %p186 = pneg %p99
        %p187 = pneg %p130
        %p188 = pneg %p127
        %s189 = sand.u32 %s117, 1
        %s190 = scalar_lea.sflag [#allocation7], %s189
        %s191 = sand.u32 %s117, 1
        %s192 = smul.addr %s191, 8
        %s193 = scalar_lea.vmem [#allocation6], %s192
        %p194 = scmp.lt.s32.totalorder %s29, 1
        %s195 = scalar_select %p194, %s29, 1
        %p196 = scmp.lt.s32.totalorder %s30, 1
        %s197 = scalar_select %p196, %s30, 1
        %s198 = smul.addr %s195, 2
        %s199 = sadd.s32 %s197, %s198
        %s200 = smul.addr %s199, 8
        %s201 = scalar_lea.vmem %s4, %s200
        %s202 = sand.u32 %s30, 1
        %p203 = scmp.eq.s32.totalorder %s30, 0
        // Predicated region
        $region33: #{tpu_custom_call.1} parent=31 // pred_check
          %p204 = pneg %p203
        $region34: #{tpu_custom_call.1} parent=31 // pred_check_branch
          %206 = sbr.rel (%p204) target = $region36
        $region35: #{tpu_custom_call.1} parent=31 // pred_region
          %s207 = smul.u32 %s29, 128
          %s208 = sld [smem:[#allocation5 + %s207]]
          %s209 = smul.addr %s208, 16
          %s210 = scalar_lea.hbm %s1, %s209
          // Predicated region
          $region37: #{tpu_custom_call.1} parent=35 // pred_check
            _
          $region38: #{tpu_custom_call.1} parent=35 // pred_check_branch
            %212 = sbr.rel target = $region40
          $region39: #{tpu_custom_call.1} parent=35 // pred_region
            %213 = sst [smem:[#allocation10]] [#allocation9]
            %214 = sst [smem:[#allocation11]] [#allocation8]
          $region40: #{tpu_custom_call.1} parent=35 // pred_fallthru
            _
          %216 = shalt.err (0)
          %s218 = sshll.u32 [#allocation2], 4
          %s219 = int_to_ptr.vmem [resolvable:$true] %s218
          %221 = dma.hbm_to_vmem [thread:$0]  %s210, 16, %s219, [#allocation3]
          %s222 = sadd.s32 %s207, 1
          %s223 = sld [smem:[#allocation5 + %s222]]
          %s224 = smul.addr %s223, 16
          %s225 = scalar_lea.hbm %s1, %s224
          %s226 = scalar_lea.vmem [#allocation2], 1
          // Predicated region
          $region41: #{tpu_custom_call.1} parent=35 // pred_check
            _
          $region42: #{tpu_custom_call.1} parent=35 // pred_check_branch
            %228 = sbr.rel target = $region44
          $region43: #{tpu_custom_call.1} parent=35 // pred_region
            %229 = sst [smem:[#allocation10]] [#allocation13]
            %230 = sst [smem:[#allocation11]] [#allocation12]
          $region44: #{tpu_custom_call.1} parent=35 // pred_fallthru
            _
          %232 = shalt.err (0)
          %s234 = sshll.u32 %s226, 4
          %s235 = int_to_ptr.vmem [resolvable:$true] %s234
          %237 = dma.hbm_to_vmem [thread:$0]  %s225, 16, %s235, [#allocation3]
          %s238 = sadd.s32 %s207, 2
          %s239 = sld [smem:[#allocation5 + %s238]]
          %s240 = smul.addr %s239, 16
          %s241 = scalar_lea.hbm %s1, %s240
          %s242 = scalar_lea.vmem [#allocation2], 2
          // Predicated region
          $region45: #{tpu_custom_call.1} parent=35 // pred_check
            _
          $region46: #{tpu_custom_call.1} parent=35 // pred_check_branch
            %244 = sbr.rel target = $region48
          $region47: #{tpu_custom_call.1} parent=35 // pred_region
            %245 = sst [smem:[#allocation10]] [#allocation15]
            %246 = sst [smem:[#allocation11]] [#allocation14]
          $region48: #{tpu_custom_call.1} parent=35 // pred_fallthru
            _
          %248 = shalt.err (0)
          %s250 = sshll.u32 %s242, 4
          %s251 = int_to_ptr.vmem [resolvable:$true] %s250
          %253 = dma.hbm_to_vmem [thread:$0]  %s241, 16, %s251, [#allocation3]
          %s254 = sadd.s32 %s207, 3
          %s255 = sld [smem:[#allocation5 + %s254]]
          %s256 = smul.addr %s255, 16
          %s257 = scalar_lea.hbm %s1, %s256
          %s258 = scalar_lea.vmem [#allocation2], 3
          // Predicated region
          $region49: #{tpu_custom_call.1} parent=35 // pred_check
            _
          $region50: #{tpu_custom_call.1} parent=35 // pred_check_branch
            %260 = sbr.rel target = $region52
          $region51: #{tpu_custom_call.1} parent=35 // pred_region
            %261 = sst [smem:[#allocation10]] [#allocation17]
            %262 = sst [smem:[#allocation11]] [#allocation16]
          $region52: #{tpu_custom_call.1} parent=35 // pred_fallthru
            _
          %264 = shalt.err (0)
          %s266 = sshll.u32 %s258, 4
          %s267 = int_to_ptr.vmem [resolvable:$true] %s266
          %269 = dma.hbm_to_vmem [thread:$0]  %s257, 16, %s267, [#allocation3]
          %s270 = sadd.s32 %s207, 4
          %s271 = sld [smem:[#allocation5 + %s270]]
          %s272 = smul.addr %s271, 16
          %s273 = scalar_lea.hbm %s1, %s272
          %s274 = scalar_lea.vmem [#allocation2], 4
          // Predicated region
          $region53: #{tpu_custom_call.1} parent=35 // pred_check
            _
          $region54: #{tpu_custom_call.1} parent=35 // pred_check_branch
            %276 = sbr.rel target = $region56
          $region55: #{tpu_custom_call.1} parent=35 // pred_region
            %277 = sst [smem:[#allocation10]] [#allocation19]
            %278 = sst [smem:[#allocation11]] [#allocation18]
          $region56: #{tpu_custom_call.1} parent=35 // pred_fallthru
            _
          %280 = shalt.err (0)
          %s282 = sshll.u32 %s274, 4
          %s283 = int_to_ptr.vmem [resolvable:$true] %s282
          %285 = dma.hbm_to_vmem [thread:$0]  %s273, 16, %s283, [#allocation3]
          %s286 = sadd.s32 %s207, 5
          %s287 = sld [smem:[#allocation5 + %s286]]
          %s288 = smul.addr %s287, 16
          %s289 = scalar_lea.hbm %s1, %s288
          %s290 = scalar_lea.vmem [#allocation2], 5
          // Predicated region
          $region57: #{tpu_custom_call.1} parent=35 // pred_check
            _
          $region58: #{tpu_custom_call.1} parent=35 // pred_check_branch
            %292 = sbr.rel target = $region60
          $region59: #{tpu_custom_call.1} parent=35 // pred_region
            %293 = sst [smem:[#allocation10]] [#allocation21]
            %294 = sst [smem:[#allocation11]] [#allocation20]
          $region60: #{tpu_custom_call.1} parent=35 // pred_fallthru
            _
          %296 = shalt.err (0)
          %s298 = sshll.u32 %s290, 4
          %s299 = int_to_ptr.vmem [resolvable:$true] %s298
          %301 = dma.hbm_to_vmem [thread:$0]  %s289, 16, %s299, [#allocation3]
          %s302 = sadd.s32 %s207, 6
          %s303 = sld [smem:[#allocation5 + %s302]]
          %s304 = smul.addr %s303, 16
          %s305 = scalar_lea.hbm %s1, %s304
          %s306 = scalar_lea.vmem [#allocation2], 6
          // Predicated region
          $region61: #{tpu_custom_call.1} parent=35 // pred_check
            _
          $region62: #{tpu_custom_call.1} parent=35 // pred_check_branch
            %308 = sbr.rel target = $region64
          $region63: #{tpu_custom_call.1} parent=35 // pred_region
            %309 = sst [smem:[#allocation10]] [#allocation23]
            %310 = sst [smem:[#allocation11]] [#allocation22]
          $region64: #{tpu_custom_call.1} parent=35 // pred_fallthru
            _
          %312 = shalt.err (0)
          %s314 = sshll.u32 %s306, 4
          %s315 = int_to_ptr.vmem [resolvable:$true] %s314
          %317 = dma.hbm_to_vmem [thread:$0]  %s305, 16, %s315, [#allocation3]
          %s318 = sadd.s32 %s207, 7
          %s319 = sld [smem:[#allocation5 + %s318]]
          %s320 = smul.addr %s319, 16
          %s321 = scalar_lea.hbm %s1, %s320
          %s322 = scalar_lea.vmem [#allocation2], 7
          // Predicated region
          $region65: #{tpu_custom_call.1} parent=35 // pred_check
            _
          $region66: #{tpu_custom_call.1} parent=35 // pred_check_branch
            %324 = sbr.rel target = $region68
          $region67: #{tpu_custom_call.1} parent=35 // pred_region
            %325 = sst [smem:[#allocation10]] [#allocation25]
            %326 = sst [smem:[#allocation11]] [#allocation24]
          $region68: #{tpu_custom_call.1} parent=35 // pred_fallthru
            _
          %328 = shalt.err (0)
          %s330 = sshll.u32 %s322, 4
          %s331 = int_to_ptr.vmem [resolvable:$true] %s330
          %333 = dma.hbm_to_vmem [thread:$0]  %s321, 16, %s331, [#allocation3]
        $region36: #{tpu_custom_call.1} parent=31 // pred_fallthru
          _
        %s334 = sadd.s32 %s30, 1
        %p335 = scmp.lt.s32.totalorder %s334, 2
        // Predicated region
        $region69: #{tpu_custom_call.1} parent=31 // pred_check
          %p336 = pneg %p335
        $region70: #{tpu_custom_call.1} parent=31 // pred_check_branch
          %338 = sbr.rel (%p336) target = $region72
        $region71: #{tpu_custom_call.1} parent=31 // pred_region
          %s339 = ssub.s32 1, %s202
          %s340 = smul.u32 %s334, 8
          %s341 = sshra.s32 %s340, 7
          %s342 = sand.u32 %s340, 127
          %s343 = sadd.s32 %s341, %s29
          %s344 = smul.u32 %s343, 128
          %s345 = sshra.s32 %s340, 7
          %s346 = sand.u32 %s340, 127
          %s347 = sadd.s32 %s344, %s346
          %s348 = sld [smem:[#allocation5 + %s347]]
          %s349 = smul.addr %s348, 16
          %s350 = scalar_lea.hbm %s1, %s349
          %s351 = smul.u32 %s339, 8
          %s352 = scalar_lea.vmem [#allocation2], %s351
          %s353 = scalar_lea.sflag [#allocation3], %s339
          // Predicated region
          $region73: #{tpu_custom_call.1} parent=71 // pred_check
            _
          $region74: #{tpu_custom_call.1} parent=71 // pred_check_branch
            %355 = sbr.rel target = $region76
          $region75: #{tpu_custom_call.1} parent=71 // pred_region
            %356 = sst [smem:[#allocation10]] [#allocation27]
            %357 = sst [smem:[#allocation11]] [#allocation26]
          $region76: #{tpu_custom_call.1} parent=71 // pred_fallthru
            _
          %359 = shalt.err (0)
          %s361 = sshll.u32 %s352, 4
          %s362 = int_to_ptr.vmem [resolvable:$true] %s361
          %364 = dma.hbm_to_vmem [thread:$0]  %s350, 16, %s362, %s353
          %s365 = sadd.s32 %s340, 1
          %s366 = sshra.s32 %s365, 7
          %s367 = sand.u32 %s365, 127
          %s368 = sadd.s32 %s366, %s29
          %s369 = smul.u32 %s368, 128
          %s370 = sshra.s32 %s365, 7
          %s371 = sand.u32 %s365, 127
          %s372 = sadd.s32 %s369, %s371
          %s373 = sld [smem:[#allocation5 + %s372]]
          %s374 = smul.addr %s373, 16
          %s375 = scalar_lea.hbm %s1, %s374
          %s376 = sadd.s32 1, %s351
          %s377 = scalar_lea.vmem [#allocation2], %s376
          // Predicated region
          $region77: #{tpu_custom_call.1} parent=71 // pred_check
            _
          $region78: #{tpu_custom_call.1} parent=71 // pred_check_branch
            %379 = sbr.rel target = $region80
          $region79: #{tpu_custom_call.1} parent=71 // pred_region
            %380 = sst [smem:[#allocation10]] [#allocation29]
            %381 = sst [smem:[#allocation11]] [#allocation28]
          $region80: #{tpu_custom_call.1} parent=71 // pred_fallthru
            _
          %383 = shalt.err (0)
          %s385 = sshll.u32 %s377, 4
          %s386 = int_to_ptr.vmem [resolvable:$true] %s385
          %388 = dma.hbm_to_vmem [thread:$0]  %s375, 16, %s386, %s353
          %s389 = sadd.s32 %s340, 2
          %s390 = sshra.s32 %s389, 7
          %s391 = sand.u32 %s389, 127
          %s392 = sadd.s32 %s390, %s29
          %s393 = smul.u32 %s392, 128
          %s394 = sshra.s32 %s389, 7
          %s395 = sand.u32 %s389, 127
          %s396 = sadd.s32 %s393, %s395
          %s397 = sld [smem:[#allocation5 + %s396]]
          %s398 = smul.addr %s397, 16
          %s399 = scalar_lea.hbm %s1, %s398
          %s400 = sadd.s32 2, %s351
          %s401 = scalar_lea.vmem [#allocation2], %s400
          // Predicated region
          $region81: #{tpu_custom_call.1} parent=71 // pred_check
            _
          $region82: #{tpu_custom_call.1} parent=71 // pred_check_branch
            %403 = sbr.rel target = $region84
          $region83: #{tpu_custom_call.1} parent=71 // pred_region
            %404 = sst [smem:[#allocation10]] [#allocation31]
            %405 = sst [smem:[#allocation11]] [#allocation30]
          $region84: #{tpu_custom_call.1} parent=71 // pred_fallthru
            _
          %407 = shalt.err (0)
          %s409 = sshll.u32 %s401, 4
          %s410 = int_to_ptr.vmem [resolvable:$true] %s409
          %412 = dma.hbm_to_vmem [thread:$0]  %s399, 16, %s410, %s353
          %s413 = sadd.s32 %s340, 3
          %s414 = sshra.s32 %s413, 7
          %s415 = sand.u32 %s413, 127
          %s416 = sadd.s32 %s414, %s29
          %s417 = smul.u32 %s416, 128
          %s418 = sshra.s32 %s413, 7
          %s419 = sand.u32 %s413, 127
          %s420 = sadd.s32 %s417, %s419
          %s421 = sld [smem:[#allocation5 + %s420]]
          %s422 = smul.addr %s421, 16
          %s423 = scalar_lea.hbm %s1, %s422
          %s424 = sadd.s32 3, %s351
          %s425 = scalar_lea.vmem [#allocation2], %s424
          // Predicated region
          $region85: #{tpu_custom_call.1} parent=71 // pred_check
            _
          $region86: #{tpu_custom_call.1} parent=71 // pred_check_branch
            %427 = sbr.rel target = $region88
          $region87: #{tpu_custom_call.1} parent=71 // pred_region
            %428 = sst [smem:[#allocation10]] [#allocation33]
            %429 = sst [smem:[#allocation11]] [#allocation32]
          $region88: #{tpu_custom_call.1} parent=71 // pred_fallthru
            _
          %431 = shalt.err (0)
          %s433 = sshll.u32 %s425, 4
          %s434 = int_to_ptr.vmem [resolvable:$true] %s433
          %436 = dma.hbm_to_vmem [thread:$0]  %s423, 16, %s434, %s353
          %s437 = sadd.s32 %s340, 4
          %s438 = sshra.s32 %s437, 7
          %s439 = sand.u32 %s437, 127
          %s440 = sadd.s32 %s438, %s29
          %s441 = smul.u32 %s440, 128
          %s442 = sshra.s32 %s437, 7
          %s443 = sand.u32 %s437, 127
          %s444 = sadd.s32 %s441, %s443
          %s445 = sld [smem:[#allocation5 + %s444]]
          %s446 = smul.addr %s445, 16
          %s447 = scalar_lea.hbm %s1, %s446
          %s448 = sadd.s32 4, %s351
          %s449 = scalar_lea.vmem [#allocation2], %s448
          // Predicated region
          $region89: #{tpu_custom_call.1} parent=71 // pred_check
            _
          $region90: #{tpu_custom_call.1} parent=71 // pred_check_branch
            %451 = sbr.rel target = $region92
          $region91: #{tpu_custom_call.1} parent=71 // pred_region
            %452 = sst [smem:[#allocation10]] [#allocation35]
            %453 = sst [smem:[#allocation11]] [#allocation34]
          $region92: #{tpu_custom_call.1} parent=71 // pred_fallthru
            _
          %455 = shalt.err (0)
          %s457 = sshll.u32 %s449, 4
          %s458 = int_to_ptr.vmem [resolvable:$true] %s457
          %460 = dma.hbm_to_vmem [thread:$0]  %s447, 16, %s458, %s353
          %s461 = sadd.s32 %s340, 5
          %s462 = sshra.s32 %s461, 7
          %s463 = sand.u32 %s461, 127
          %s464 = sadd.s32 %s462, %s29
          %s465 = smul.u32 %s464, 128
          %s466 = sshra.s32 %s461, 7
          %s467 = sand.u32 %s461, 127
          %s468 = sadd.s32 %s465, %s467
          %s469 = sld [smem:[#allocation5 + %s468]]
          %s470 = smul.addr %s469, 16
          %s471 = scalar_lea.hbm %s1, %s470
          %s472 = sadd.s32 5, %s351
          %s473 = scalar_lea.vmem [#allocation2], %s472
          // Predicated region
          $region93: #{tpu_custom_call.1} parent=71 // pred_check
            _
          $region94: #{tpu_custom_call.1} parent=71 // pred_check_branch
            %475 = sbr.rel target = $region96
          $region95: #{tpu_custom_call.1} parent=71 // pred_region
            %476 = sst [smem:[#allocation10]] [#allocation37]
            %477 = sst [smem:[#allocation11]] [#allocation36]
          $region96: #{tpu_custom_call.1} parent=71 // pred_fallthru
            _
          %479 = shalt.err (0)
          %s481 = sshll.u32 %s473, 4
          %s482 = int_to_ptr.vmem [resolvable:$true] %s481
          %484 = dma.hbm_to_vmem [thread:$0]  %s471, 16, %s482, %s353
          %s485 = sadd.s32 %s340, 6
          %s486 = sshra.s32 %s485, 7
          %s487 = sand.u32 %s485, 127
          %s488 = sadd.s32 %s486, %s29
          %s489 = smul.u32 %s488, 128
          %s490 = sshra.s32 %s485, 7
          %s491 = sand.u32 %s485, 127
          %s492 = sadd.s32 %s489, %s491
          %s493 = sld [smem:[#allocation5 + %s492]]
          %s494 = smul.addr %s493, 16
          %s495 = scalar_lea.hbm %s1, %s494
          %s496 = sadd.s32 6, %s351
          %s497 = scalar_lea.vmem [#allocation2], %s496
          // Predicated region
          $region97: #{tpu_custom_call.1} parent=71 // pred_check
            _
          $region98: #{tpu_custom_call.1} parent=71 // pred_check_branch
            %499 = sbr.rel target = $region100
          $region99: #{tpu_custom_call.1} parent=71 // pred_region
            %500 = sst [smem:[#allocation10]] [#allocation39]
            %501 = sst [smem:[#allocation11]] [#allocation38]
          $region100: #{tpu_custom_call.1} parent=71 // pred_fallthru
            _
          %503 = shalt.err (0)
          %s505 = sshll.u32 %s497, 4
          %s506 = int_to_ptr.vmem [resolvable:$true] %s505
          %508 = dma.hbm_to_vmem [thread:$0]  %s495, 16, %s506, %s353
          %s509 = sadd.s32 %s340, 7
          %s510 = sshra.s32 %s509, 7
          %s511 = sand.u32 %s509, 127
          %s512 = sadd.s32 %s510, %s29
          %s513 = smul.u32 %s512, 128
          %s514 = sshra.s32 %s509, 7
          %s515 = sand.u32 %s509, 127
          %s516 = sadd.s32 %s513, %s515
          %s517 = sld [smem:[#allocation5 + %s516]]
          %s518 = smul.addr %s517, 16
          %s519 = scalar_lea.hbm %s1, %s518
          %s520 = sadd.s32 7, %s351
          %s521 = scalar_lea.vmem [#allocation2], %s520
          // Predicated region
          $region101: #{tpu_custom_call.1} parent=71 // pred_check
            _
          $region102: #{tpu_custom_call.1} parent=71 // pred_check_branch
            %523 = sbr.rel target = $region104
          $region103: #{tpu_custom_call.1} parent=71 // pred_region
            %524 = sst [smem:[#allocation10]] [#allocation41]
            %525 = sst [smem:[#allocation11]] [#allocation40]
          $region104: #{tpu_custom_call.1} parent=71 // pred_fallthru
            _
          %527 = shalt.err (0)
          %s529 = sshll.u32 %s521, 4
          %s530 = int_to_ptr.vmem [resolvable:$true] %s529
          %532 = dma.hbm_to_vmem [thread:$0]  %s519, 16, %s530, %s353
        $region72: #{tpu_custom_call.1} parent=31 // pred_fallthru
          _
        %s533 = smul.u32 %s202, 8
        %s534 = scalar_lea.vmem [#allocation2], %s533
        %s535 = scalar_lea.sflag [#allocation3], %s202
        %s536 = smul.u32 8, 1
        %s537 = sshll.u32 %s536, 4
        %538 = dma.done %s535, %s537
        %s539 = smul.u32 %s30, 8
        %v540 = vld [vmem:[%s534] sm:$0xff]
        %s541 = scalar_lea.vmem %s2, %s539
        %v542 = vld [vmem:[%s541] sm:$0xff]
        %v543 = vld [vmem:[%s3] sm:$0x1]
        %v544 = vld [vmem:[%s3 + $0x1] sm:$0x1]
        %v545 = vld [vmem:[%s201] sm:$0xff]
        %v546 = vsub.f32 %v544, %v543
        %548 = vset.pattern.permute.xlu0 0
        %549 = vperm.xlu0 %548, %v545
        %v550 = vpop.permute.xlu0 %549
        %v552 = vlaneseq
        %v553 = vshrl.u32 %v552, 7
        %v554 = vsub.s32 0, %v553
        %v555 = vrot.slane %v546, %v554
        %v556 = vmul.f32 %v550, %v555
        %v557 = vlaneseq
        %v558 = vshrl.u32 %v557, 7
        %v559 = vsub.s32 0, %v558
        %v560 = vrot.slane %v543, %v559
        %v561 = vadd.f32 %v560, %v556
        %v562 = vadd.f32 %v540, %v542
        %v563 = vadd.f32 %v562, %v561
        %564 = vst [vmem:[%s193] sm:$0xff] %v563
        %s565 = sand.u32 %s117, 1
        %s566 = scalar_lea.sflag [#allocation7], %s565
        %s567 = sand.u32 %s117, 1
        %s568 = smul.addr %s567, 8
        %s569 = scalar_lea.vmem [#allocation6], %s568
        // Predicated region
        $region105: #{tpu_custom_call.1} parent=31 // pred_check
          %p570 = pneg %p127
        $region106: #{tpu_custom_call.1} parent=31 // pred_check_branch
          %572 = sbr.rel (%p570) target = $region108
        $region107: #{tpu_custom_call.1} parent=31 // pred_region
          %s574 = ssub.s32 128, 128
          %575 = vsyncadd %s566, %s574
          %s576 = smul.addr %s29, 2
          %s577 = sadd.s32 %s30, %s576
          %s578 = smul.addr %s577, 128
          %s579 = scalar_lea.hbm %s5, %s578
          %s581 = sshll.u32 %s569, 4
          %s582 = int_to_ptr.vmem [resolvable:$true] %s581
          %584 = dma.vmem_to_hbm [thread:$0]  %s582, 128, %s579, %s566
        $region108: #{tpu_custom_call.1} parent=31 // pred_fallthru
          _
      $region32: #{tpu_custom_call.1} parent=5 // pred_fallthru
        _
      %p585 = scmp.le.s32.totalorder 2, %s20
      // Predicated region
      $region109: #{tpu_custom_call.1} parent=5 // pred_check
        %p586 = pneg %p585
      $region110: #{tpu_custom_call.1} parent=5 // pred_check_branch
        %588 = sbr.rel (%p586) target = $region112
      $region111: #{tpu_custom_call.1} parent=5 // pred_region
        %s589 = ssub.s32 %s20, 2
        // Predicated region
        $region113: #{tpu_custom_call.1} parent=111 // pred_check
          %p590 = pneg %p133
        $region114: #{tpu_custom_call.1} parent=111 // pred_check_branch
          %592 = sbr.rel (%p590) target = $region116
        $region115: #{tpu_custom_call.1} parent=111 // pred_region
          %s593 = sand.u32 %s118, 1
          %s594 = scalar_lea.sflag [#allocation7], %s593
          %s595 = sand.u32 %s118, 1
          %s596 = smul.addr %s595, 8
          %s597 = scalar_lea.vmem [#allocation6], %s596
          %598 = dma.done %s594, 128
        $region116: #{tpu_custom_call.1} parent=111 // pred_fallthru
          _
      $region112: #{tpu_custom_call.1} parent=5 // pred_fallthru
        _
    $region6: #{tpu_custom_call.1} parent=1 // loop_footer
      %s24 = sadd.s32 1, %s20
    $region7: #{tpu_custom_call.1} parent=1 // loop_footer_branch
      %19 = sbr.rel target = $region3
    $region8: #{tpu_custom_call.1} parent=1 // loop_exit
      _
    %599 = vsyncpa [#allocation7], 1
    %s600 = scalar_lea.sflag [#allocation7], 1
    %601 = vsyncpa %s600, 1
  %602 = vsyncmov [#allocation3]
  %s603 = vpop.sfrf %602
  %p604 = scmp.eq.s32.totalorder %s603, 0
  %p605 = pneg %p604
  %607 = shalt.err (%p605)
  %s608 = scalar_lea.sflag [#allocation3], 1
  %609 = vsyncmov %s608
  %s610 = vpop.sfrf %609
  %p611 = scmp.eq.s32.totalorder %s610, 0
  %p612 = pneg %p611
  %614 = shalt.err (%p612)

</llo_original>
